<compile_context>
chip_gen: v6e
topology: v6e:2x2x1
jax: 0.10.0
libtpu: 0.0.40
codegen_flags: <defaults>
</compile_context>

<pallas_src>
import math

import jax
import jax.numpy as jnp
from jax.experimental import pallas as pl
from jax.experimental.pallas import tpu as pltpu

L_ref = 150000000000.0
M_ref = 6e+24
T_ref = 31500000.0

# constant folded into the exponent: -3*log(L_ref) + 2*log(T_ref) + log(M_ref)
_LOG_CONST = -3.0 * math.log(L_ref) + 2.0 * math.log(T_ref) + math.log(M_ref)


def _orbital_kernel(tgt_ref, src_ref, gm_ref, accel_ref):
    """N-body acceleration, coordinate-major, accumulated over source (j) blocks.

    tgt_ref:   (3, TILE_I)         target positions; rows = x,y,z, lane = (batch, body).
    src_ref:   (3, TILE_J, TILE_I) source positions for this j-block, replicated per lane
                                   (per-lane source == source of that lane's batch).
    gm_ref:    (TILE_J, 1)         G * m_j for this j-block (zero on padded rows).
    accel_ref: (3, TILE_I)         lane-dense output accelerations (resident across j).
    """
    j = pl.program_id(1)

    @pl.when(j == 0)
    def _init():
        accel_ref[...] = jnp.zeros_like(accel_ref)

    # target coordinates as (1, TILE_I) rows (sublane-broadcast against sources)
    tx = tgt_ref[0:1, :]
    ty = tgt_ref[1:2, :]
    tz = tgt_ref[2:3, :]

    # pairwise differences, [j, i] = p_j - p_i   (three lane-dense 2-D slabs)
    dx = src_ref[0] - tx                     # (TILE_J, TILE_I)
    dy = src_ref[1] - ty
    dz = src_ref[2] - tz

    dist_sq = dx * dx + dy * dy + dz * dz
    dist = jnp.sqrt(dist_sq)
    # one exact reciprocal per pair; d^3 + 1e-10 matches torch exactly
    # (self / padded pairs give finite * 0 = 0, never NaN)
    inv_d3 = pl.reciprocal(dist_sq * dist + 1e-10, approx=False)
    w = gm_ref[...] * inv_d3                 # (TILE_J, 1) * (TILE_J, TILE_I)

    # reduce over source bodies (sublane axis), single (3, TILE_I) store
    ax = jnp.sum(w * dx, axis=0, keepdims=True)
    ay = jnp.sum(w * dy, axis=0, keepdims=True)
    az = jnp.sum(w * dz, axis=0, keepdims=True)
    accel_ref[...] += jnp.concatenate([ax, ay, az], axis=0)
    # TODO(synk): for dim >~ 1k, move dist_sq / the j-reduction onto the MXU via the
    # quadratic expansion + S @ inv_d3 factorization (needs diagonal zeroing).


def _largest_tile(total, base, cap):
    """Largest multiple of `base` that divides `total` and is <= cap (total % base == 0)."""
    best = base
    t = base
    lim = min(total, max(base, cap))
    while t <= lim:
        if total % t == 0:
            best = t
        t += base
    return best


def _select_hw_budget():
    """(cap_tile_i, cap_tile_j, vmem_limit_bytes), generation aware."""
    vmem_cap = 64 * 1024 * 1024
    try:
        info = pltpu.get_tpu_info()
        vmem_cap = int(getattr(info, "vmem_capacity_bytes", vmem_cap))
    except Exception:
        pass
    if vmem_cap >= 96 * 1024 * 1024:
        # v5e / v6e: 128 MiB VMEM per core -> larger tiles, fewer grid steps
        return 1024, 512, 64 * 1024 * 1024
    # v7x: 64 MiB physical VMEM per TensorCore -> modest tiles, <=28 MiB scoped budget
    return 512, 256, 28 * 1024 * 1024


def orbital_dynamics_forward_batched(t, states, ln_G, ln_mass):
    """Batched Pallas equivalent of OrbitalDynamics.forward.

    states: (B, 2*dim, 3).  Returns d(state)/dt of the same shape.  `t` unused
    (autonomous ODE).  Batch many odeint states / RK stages here to amortize
    kernel launch cost.
    """
    del t
    dim = int(ln_mass.shape[0])
    B = int(states.shape[0])
    assert states.shape[1:] == (2 * dim, 3), states.shape

    states_f32 = states.astype(jnp.float32)
    pos = states_f32[:, :dim, :]                        # (B, dim, 3)
    vel = states_f32[:, dim:, :]                        # (B, dim, 3)

    nt = B * dim                                        # targets on the lane axis
    l_pad = max(128, ((nt + 127) // 128) * 128)
    dsrc_pad = max(8, ((dim + 7) // 8) * 8)             # sources on the sublane axis

    cap_i, cap_j, vmem_limit = _select_hw_budget()
    # keep >= 2 parallel i-steps when possible so v7x's 2 TensorCores both get work
    cap_i = min(cap_i, max(128, l_pad // 2))
    tile_i = _largest_tile(l_pad, 128, cap_i)
    tile_j = _largest_tile(dsrc_pad, 8, cap_j)

    # parameter glue: G folded into per-source weight; m_i cancels algebraically
    G = jnp.exp(jnp.asarray(ln_G, dtype=jnp.float32) + _LOG_CONST)
    masses = jnp.exp(jnp.asarray(ln_mass, dtype=jnp.float32))       # (dim,)
    gm = G * masses                                                 # (dim,)
    gm_col = jnp.zeros((dsrc_pad, 1), jnp.float32).at[:dim, 0].set(gm)

    # lane-dense targets: rows x,y,z; lane l = b*dim + i  (zero padded)
    tgt = jnp.zeros((3, l_pad), jnp.float32).at[:, :nt].set(pos.reshape(nt, 3).T)

    # lane-dense sources: src[c, j, b*dim + i] = pos[b, j, c] — the block-diagonal
    # (same-batch only) pairing is encoded by replicating each batch's sources over
    # that batch's target lanes.  Padded rows/lanes contribute exactly zero.
    src_cjb = jnp.transpose(pos, (2, 1, 0))                         # (3, dim, B)
    src_rep = jnp.broadcast_to(src_cjb[:, :, :, None],
                               (3, dim, B, dim)).reshape(3, dim, nt)
    src = jnp.zeros((3, dsrc_pad, l_pad), jnp.float32).at[:, :dim, :nt].set(src_rep)

    accel = pl.pallas_call(
        _orbital_kernel,
        out_shape=jax.ShapeDtypeStruct((3, l_pad), jnp.float32),
        grid=(l_pad // tile_i, dsrc_pad // tile_j),
        in_specs=[
            pl.BlockSpec((3, tile_i), lambda i, j: (0, i)),           # targets
            pl.BlockSpec((3, tile_j, tile_i), lambda i, j: (0, j, i)),  # sources
            pl.BlockSpec((tile_j, 1), lambda i, j: (j, 0)),           # G*m_j column
        ],
        out_specs=pl.BlockSpec((3, tile_i), lambda i, j: (0, i)),
        compiler_params=pltpu.CompilerParams(
            dimension_semantics=("parallel", "arbitrary"),
            vmem_limit_bytes=vmem_limit,
        ),
    )(tgt, src, gm_col)

    dvel = accel[:, :nt].T.reshape(B, dim, 3)
    # dpos = vel passes straight through in the wrapper (free layout plumbing)
    return jnp.concatenate([vel, dvel], axis=1)


def orbital_dynamics_forward(t, state, ln_G, ln_mass):
    """Single-state, module-equivalent forward: state (2*dim, 3) -> (2*dim, 3)."""
    return orbital_dynamics_forward_batched(t, state[None], ln_G, ln_mass)[0]


def _reference(state, ln_G, ln_mass):
    """Pure-jnp transcription of the PyTorch forward, for verification."""
    dim = ln_mass.shape[0]
    pos = state[:dim]
    vel = state[dim:]
    diff = pos[None, :, :] - pos[:, None, :]
    dist = jnp.linalg.norm(diff, axis=2)
    dist_cubed = dist ** 3 + 1e-10
    G = jnp.exp(ln_G + _LOG_CONST)
    masses = jnp.exp(ln_mass)
    forces = (G * (masses[None, :] * masses[:, None])[:, :, None]
              * diff / dist_cubed[:, :, None])
    total_force = jnp.sum(forces, axis=1)
    dvel = total_force / masses[:, None]
    return jnp.concatenate([vel, dvel], axis=0)


if __name__ == "__main__":
    # Deterministic parameters, exactly as in OrbitalDynamics.__init__ defaults
    # (earth_only_dict -> dim = 2).
    ln_G = jnp.float32(-23.0)
    ln_mass = jnp.array([12.0, 0.0], dtype=jnp.float32)
    initial_pos = jnp.array([[0.0, 0.0, 0.0],
                             [1.0, 0.0, 0.0]], dtype=jnp.float32)
    initial_vel = jnp.array([[0.0, 0.0, 0.0],
                             [0.0, -6.28, 0.0]], dtype=jnp.float32)
    base_state = jnp.concatenate([initial_pos, initial_vel], axis=0)  # (4, 3)

    key = jax.random.PRNGKey(0)
    k1, k2 = jax.random.split(key)
    t = jnp.float32(0.0)

    # 1) single-state forward (module-equivalent call signature)
    state = base_state + 0.01 * jax.random.normal(k1, (4, 3), dtype=jnp.float32)
    out1 = jax.block_until_ready(orbital_dynamics_forward(t, state, ln_G, ln_mass))
    ref1 = _reference(state, ln_G, ln_mass)
    assert out1.shape == (4, 3) and out1.dtype == jnp.float32
    assert jnp.allclose(out1, ref1, rtol=1e-5, atol=1e-5), (out1, ref1)

    # 2) batched forward: many odeint states / RK stages in ONE pallas_call
    B = 96
    states = base_state[None] + 0.01 * jax.random.normal(k2, (B, 4, 3),
                                                         dtype=jnp.float32)
    fwd_batched = jax.jit(orbital_dynamics_forward_batched)
    out_b = jax.block_until_ready(fwd_batched(t, states, ln_G, ln_mass))
    ref_b = jax.vmap(lambda s: _reference(s, ln_G, ln_mass))(states)
    assert out_b.shape == (B, 4, 3) and out_b.dtype == jnp.float32
    assert jnp.allclose(out_b, ref_b, rtol=1e-5, atol=1e-4), "batched mismatch"

    # TODO(synk): simulate() relies on torchdiffeq.odeint (adaptive ODE solver);
    # only the forward() RHS is implemented as a kernel.
    print("KERNEL_OK")
</pallas_src>

<mosaic_0001>
module attributes {stable_mosaic.version = 11 : i64} {
  func.func @_orbital_kernel(%arg0: i32, %arg1: i32, %arg2: memref<3x128xf32, #tpu.memory_space<vmem>>, %arg3: memref<3x8x128xf32, #tpu.memory_space<vmem>>, %arg4: memref<8x1xf32, #tpu.memory_space<vmem>>, %arg5: memref<3x128xf32, #tpu.memory_space<vmem>>) attributes {dimension_semantics = [#tpu.dimension_semantics<parallel>, #tpu.dimension_semantics<arbitrary>], iteration_bounds = array<i64: 1, 1>, scalar_prefetch = 0 : i64, scratch_operands = 0 : i64, tpu.core_type = #tpu.core_type<tc>, window_params = [{transform_indices = @transform_0, window_bounds = array<i64: 3, 128>}, {transform_indices = @transform_1, window_bounds = array<i64: 3, 8, 128>}, {transform_indices = @transform_2, window_bounds = array<i64: 8, 1>}, {transform_indices = @transform_3, window_bounds = array<i64: 3, 128>}]} {
    %c0_i32 = arith.constant 0 : i32
    %0 = arith.cmpi eq, %arg1, %c0_i32 : i32
    %1 = arith.extui %0 : i1 to i32
    %c0_i32_0 = arith.constant 0 : i32
    %2 = arith.cmpi ne, %1, %c0_i32_0 : i32
    scf.if %2 {
      %cst_22 = arith.constant 0.000000e+00 : f32
      %44 = vector.broadcast %cst_22 : f32 to vector<3x128xf32>
      %c0_23 = arith.constant 0 : index
      %c0_24 = arith.constant 0 : index
      %45 = vector.load %arg5[%c0_23, %c0_24] : memref<3x128xf32, #tpu.memory_space<vmem>>, vector<3x128xf32>
      tpu.vector_store %arg5[%c0_23, %c0_24], %44 {strides = array<i32>} : memref<3x128xf32, #tpu.memory_space<vmem>>, vector<3x128xf32>,
    } else {
    }
    %c0 = arith.constant 0 : index
    %c0_1 = arith.constant 0 : index
    %3 = vector.load %arg2[%c0, %c0_1] : memref<3x128xf32, #tpu.memory_space<vmem>>, vector<1x128xf32>
    %c1 = arith.constant 1 : index
    %c0_2 = arith.constant 0 : index
    %4 = vector.load %arg2[%c1, %c0_2] : memref<3x128xf32, #tpu.memory_space<vmem>>, vector<1x128xf32>
    %c2 = arith.constant 2 : index
    %c0_3 = arith.constant 0 : index
    %5 = vector.load %arg2[%c2, %c0_3] : memref<3x128xf32, #tpu.memory_space<vmem>>, vector<1x128xf32>
    %c0_4 = arith.constant 0 : index
    %c0_5 = arith.constant 0 : index
    %c0_6 = arith.constant 0 : index
    %6 = vector.load %arg3[%c0_4, %c0_5, %c0_6] : memref<3x8x128xf32, #tpu.memory_space<vmem>>, vector<1x8x128xf32>
    %7 = vector.shape_cast %6 : vector<1x8x128xf32> to vector<8x128xf32>
    %8 = vector.broadcast %3 : vector<1x128xf32> to vector<8x128xf32>
    %9 = arith.subf %7, %8 : vector<8x128xf32>
    %c1_7 = arith.constant 1 : index
    %c0_8 = arith.constant 0 : index
    %c0_9 = arith.constant 0 : index
    %10 = vector.load %arg3[%c1_7, %c0_8, %c0_9] : memref<3x8x128xf32, #tpu.memory_space<vmem>>, vector<1x8x128xf32>
    %11 = vector.shape_cast %10 : vector<1x8x128xf32> to vector<8x128xf32>
    %12 = vector.broadcast %4 : vector<1x128xf32> to vector<8x128xf32>
    %13 = arith.subf %11, %12 : vector<8x128xf32>
    %c2_10 = arith.constant 2 : index
    %c0_11 = arith.constant 0 : index
    %c0_12 = arith.constant 0 : index
    %14 = vector.load %arg3[%c2_10, %c0_11, %c0_12] : memref<3x8x128xf32, #tpu.memory_space<vmem>>, vector<1x8x128xf32>
    %15 = vector.shape_cast %14 : vector<1x8x128xf32> to vector<8x128xf32>
    %16 = vector.broadcast %5 : vector<1x128xf32> to vector<8x128xf32>
    %17 = arith.subf %15, %16 : vector<8x128xf32>
    %18 = arith.mulf %9, %9 : vector<8x128xf32>
    %19 = arith.mulf %13, %13 : vector<8x128xf32>
    %20 = arith.addf %18, %19 : vector<8x128xf32>
    %21 = arith.mulf %17, %17 : vector<8x128xf32>
    %22 = arith.addf %20, %21 : vector<8x128xf32>
    %23 = math.sqrt %22 : vector<8x128xf32>
    %24 = arith.mulf %22, %23 : vector<8x128xf32>
    %cst = arith.constant 1.000000e-10 : f32
    %25 = vector.broadcast %cst : f32 to vector<8x128xf32>
    %26 = arith.addf %24, %25 : vector<8x128xf32>
    %27 = tpu.reciprocal %26 : vector<8x128xf32> -> vector<8x128xf32>
    %c0_13 = arith.constant 0 : index
    %c0_14 = arith.constant 0 : index
    %28 = vector.load %arg4[%c0_13, %c0_14] : memref<8x1xf32, #tpu.memory_space<vmem>>, vector<8x1xf32>
    %29 = vector.broadcast %28 : vector<8x1xf32> to vector<8x128xf32>
    %30 = arith.mulf %29, %27 : vector<8x128xf32>
    %31 = arith.mulf %30, %9 : vector<8x128xf32>
    %cst_15 = arith.constant dense<0.000000e+00> : vector<128xf32>
    %32 = vector.multi_reduction <add>, %31, %cst_15 [0] : vector<8x128xf32> to vector<128xf32>
    %33 = vector.shape_cast %32 : vector<128xf32> to vector<1x128xf32>
    %34 = arith.mulf %30, %13 : vector<8x128xf32>
    %cst_16 = arith.constant dense<0.000000e+00> : vector<128xf32>
    %35 = vector.multi_reduction <add>, %34, %cst_16 [0] : vector<8x128xf32> to vector<128xf32>
    %36 = vector.shape_cast %35 : vector<128xf32> to vector<1x128xf32>
    %37 = arith.mulf %30, %17 : vector<8x128xf32>
    %cst_17 = arith.constant dense<0.000000e+00> : vector<128xf32>
    %38 = vector.multi_reduction <add>, %37, %cst_17 [0] : vector<8x128xf32> to vector<128xf32>
    %39 = vector.shape_cast %38 : vector<128xf32> to vector<1x128xf32>
    %c0_18 = arith.constant 0 : index
    %c0_19 = arith.constant 0 : index
    %40 = vector.load %arg5[%c0_18, %c0_19] : memref<3x128xf32, #tpu.memory_space<vmem>>, vector<3x128xf32>
    %41 = tpu.concatenate %33, %36, %39 in 0 : vector<1x128xf32>, vector<1x128xf32>, vector<1x128xf32> -> vector<3x128xf32>
    %42 = arith.addf %40, %41 : vector<3x128xf32>
    %c0_20 = arith.constant 0 : index
    %c0_21 = arith.constant 0 : index
    %43 = vector.load %arg5[%c0_20, %c0_21] : memref<3x128xf32, #tpu.memory_space<vmem>>, vector<3x128xf32>
    tpu.vector_store %arg5[%c0_20, %c0_21], %42 {strides = array<i32>} : memref<3x128xf32, #tpu.memory_space<vmem>>, vector<3x128xf32>,
    return
  }
  func.func @transform_0(%arg0: i32, %arg1: i32) -> (i32, i32) {
    %c0_i32 = arith.constant 0 : i32
    %c0_i32_0 = arith.constant 0 : i32
    return %c0_i32, %arg0 : i32, i32
  }
  func.func @transform_1(%arg0: i32, %arg1: i32) -> (i32, i32, i32) {
    %c0_i32 = arith.constant 0 : i32
    %c0_i32_0 = arith.constant 0 : i32
    return %c0_i32, %arg1, %arg0 : i32, i32, i32
  }
  func.func @transform_2(%arg0: i32, %arg1: i32) -> (i32, i32) {
    %c0_i32 = arith.constant 0 : i32
    %c0_i32_0 = arith.constant 0 : i32
    return %arg1, %c0_i32 : i32, i32
  }
  func.func @transform_3(%arg0: i32, %arg1: i32) -> (i32, i32) {
    %c0_i32 = arith.constant 0 : i32
    %c0_i32_0 = arith.constant 0 : i32
    return %c0_i32, %arg0 : i32, i32
  }
}

</mosaic_0001>

<llo_original>
// kernel: tpu_custom_call.1
$region0: #{tpu_custom_call.1}
  #allocation0 [shape = 'u32[]', space=smem, size = 0x4, offset = 0x4, fixed_abs, tag = 'smem constant byte address 0x4 - core index']
  #allocation1 [shape = 'u32[144,128]{1,0:T(1,128)}', space=vmem, size = 0x12000, scoped, tag = 'internal scratch']
  %s0 = inlined_call_operand.vmem [shape: f32[3,128], index: 0, kind: input, shape index: {}]
  %s1 = inlined_call_operand.hbm [shape: f32[3,8,128], index: 1, kind: input, shape index: {}]
  %s2 = inlined_call_operand.vmem [shape: f32[8,1], index: 2, kind: input, shape index: {}]
  %s3 = inlined_call_operand.hbm [shape: f32[3,128], index: 3, kind: output, shape index: {}]
  %s4 = sld [smem:[#allocation0]]
  $region30: #{tpu_custom_call.1} parent=0
    _
  %s6 = ssub.s32 1, %s4
  %s7 = scalar_select 0, %s6, %s4
  $region1: #{tpu_custom_call.1} parent=0
    #allocation2 [shape = 'u8[12288]{0}', space=vmem, size = 0x3000, scoped, tag = 'input window, operand 1, single buffered']
    #allocation3 [shape = 's32[1]{0}', space=sflag, size = 0x4, scoped, tag = 'scoped memory for tpu_custom_call.1']
    #allocation4 [shape = 's32[1]{0}', space=sflag, size = 0x4, scoped, tag = 'scoped memory for tpu_custom_call.1']
    #allocation5 [shape = 'u8[2048]{0}', space=vmem, size = 0x800, scoped, tag = 'output window, operand 0, single buffered']
    %8 = vsyncpa [#allocation3], 0
    %9 = vsyncpa [#allocation4], 0
    // Predicated region
    $region2: #{tpu_custom_call.1} parent=1 // pred_check
      _
    $region3: #{tpu_custom_call.1} parent=1 // pred_check_branch
      %11 = sbr.rel (0) target = $region5
    $region4: #{tpu_custom_call.1} parent=1 // pred_region
      _
    $region5: #{tpu_custom_call.1} parent=1 // pred_fallthru
      _
    // Predicated region
    $region6: #{tpu_custom_call.1} parent=1 // pred_check
      _
    $region7: #{tpu_custom_call.1} parent=1 // pred_check_branch
      %13 = sbr.rel (0) target = $region9
    $region8: #{tpu_custom_call.1} parent=1 // pred_region
      %s15 = ssub.s32 384, 384
      %16 = vsyncadd [#allocation3], %s15
      %s17 = sshll.u32 [#allocation2], 4
      %s18 = int_to_ptr.vmem [resolvable:$true] %s17
      %23 = dma.hbm_to_vmem [thread:$0]  %s1, 384, %s18, [#allocation3], 128, 128, 8
    $region9: #{tpu_custom_call.1} parent=1 // pred_fallthru
      _
    // Predicated region
    $region10: #{tpu_custom_call.1} parent=1 // pred_check
      _
    $region11: #{tpu_custom_call.1} parent=1 // pred_check_branch
      %25 = sbr.rel (0) target = $region13
    $region12: #{tpu_custom_call.1} parent=1 // pred_region
      _
    $region13: #{tpu_custom_call.1} parent=1 // pred_fallthru
      _
    // Predicated region
    $region14: #{tpu_custom_call.1} parent=1 // pred_check
      _
    $region15: #{tpu_custom_call.1} parent=1 // pred_check_branch
      %27 = sbr.rel (0) target = $region17
    $region16: #{tpu_custom_call.1} parent=1 // pred_region
      %28 = dma.done [#allocation3], 384
    $region17: #{tpu_custom_call.1} parent=1 // pred_fallthru
      _
    %p29 = scmp.eq.s32.totalorder 0, 0
    // Predicated region
    $region18: #{tpu_custom_call.1} parent=1 // pred_check
      %p30 = pneg %p29
    $region19: #{tpu_custom_call.1} parent=1 // pred_check_branch
      %32 = sbr.rel (%p30) target = $region21
    $region20: #{tpu_custom_call.1} parent=1 // pred_region
      %33 = vst [vmem:[#allocation5] sm:$0x7] 0.0
    $region21: #{tpu_custom_call.1} parent=1 // pred_fallthru
      _
    %v34 = vld [vmem:[%s0] sm:$0x1]
    %v35 = vld [vmem:[%s0 + $0x1] sm:$0x1]
    %v36 = vld [vmem:[%s0 + $0x2] sm:$0x1]
    %v37 = vld [vmem:[#allocation2] sm:$0xff]
    %v38 = vlaneseq
    %v39 = vshrl.u32 %v38, 7
    %v40 = vsub.s32 0, %v39
    %v41 = vrot.slane %v34, %v40
    %v42 = vsub.f32 %v37, %v41
    %s43 = scalar_lea.vmem [#allocation2], 8
    %v44 = vld [vmem:[%s43] sm:$0xff]
    %v45 = vlaneseq
    %v46 = vshrl.u32 %v45, 7
    %v47 = vsub.s32 0, %v46
    %v48 = vrot.slane %v35, %v47
    %v49 = vsub.f32 %v44, %v48
    %s50 = scalar_lea.vmem [#allocation2], 16
    %v51 = vld [vmem:[%s50] sm:$0xff]
    %v52 = vlaneseq
    %v53 = vshrl.u32 %v52, 7
    %v54 = vsub.s32 0, %v53
    %v55 = vrot.slane %v36, %v54
    %v56 = vsub.f32 %v51, %v55
    %v57 = vmul.f32 %v42, %v42
    %v58 = vmul.f32 %v49, %v49
    %v59 = vadd.f32 %v57, %v58
    %v60 = vmul.f32 %v56, %v56
    %v61 = vadd.f32 %v59, %v60
    %v62 = vrsqrt.pop %v61
    %v63 = vmul.f32 %v61, %v62
    %vm64 = vcmp.eq.f32.partialorder %v61, inf
    %v65 = vsel %vm64, %v61, %v63
    %vm66 = vcmp.eq.f32.partialorder %v61, 0.0
    %v67 = vand.u32 %v61, 2147483648
    %v68 = vsel %vm66, %v67, %v65
    %v69 = vmul.f32 %v61, %v68
    %v70 = vadd.f32 %v69, 1e-10
    %v71 = vrcp.pop %v70
    %v72 = vld [vmem:[%s2] sm:$0xff]
    %74 = vset.pattern.permute.xlu0 0
    %75 = vperm.xlu0 %74, %v72
    %v76 = vpop.permute.xlu0 %75
    %v78 = vmul.f32 %v76, %v71
    %v79 = vmul.f32 %v78, %v42
    %v80 = vrot.slane %v79, 4
    %v81 = vadd.f32 %v79, %v80
    %v82 = vrot.slane %v81, 2
    %v83 = vadd.f32 %v81, %v82
    %v84 = vrot.slane %v83, 1
    %v85 = vadd.f32 %v83, %v84
    %v86 = vmul.f32 %v78, %v49
    %v87 = vrot.slane %v86, 4
    %v88 = vadd.f32 %v86, %v87
    %v89 = vrot.slane %v88, 2
    %v90 = vadd.f32 %v88, %v89
    %v91 = vrot.slane %v90, 1
    %v92 = vadd.f32 %v90, %v91
    %v93 = vmul.f32 %v78, %v56
    %v94 = vrot.slane %v93, 4
    %v95 = vadd.f32 %v93, %v94
    %v96 = vrot.slane %v95, 2
    %v97 = vadd.f32 %v95, %v96
    %v98 = vrot.slane %v97, 1
    %v99 = vadd.f32 %v97, %v98
    %v100 = vld [vmem:[#allocation5] sm:$0x7]
    %vm101 = vcmask 1040384
    %v102 = vsel %vm101, %v85, %v92
    %vm103 = vcmask 1041408
    %v104 = vsel %vm103, %v102, %v99
    %v105 = vadd.f32 %v100, %v104
    %106 = vst [vmem:[#allocation5] sm:$0x7] %v105
    // Predicated region
    $region22: #{tpu_custom_call.1} parent=1 // pred_check
      _
    $region23: #{tpu_custom_call.1} parent=1 // pred_check_branch
      %108 = sbr.rel (0) target = $region25
    $region24: #{tpu_custom_call.1} parent=1 // pred_region
      %s110 = ssub.s32 64, 64
      %111 = vsyncadd [#allocation4], %s110
      %s113 = sshll.u32 [#allocation5], 4
      %s114 = int_to_ptr.vmem [resolvable:$true] %s113
      %116 = dma.vmem_to_hbm [thread:$0]  %s114, 64, %s3, [#allocation4]
    $region25: #{tpu_custom_call.1} parent=1 // pred_fallthru
      _
    // Predicated region
    $region26: #{tpu_custom_call.1} parent=1 // pred_check
      _
    $region27: #{tpu_custom_call.1} parent=1 // pred_check_branch
      %118 = sbr.rel (0) target = $region29
    $region28: #{tpu_custom_call.1} parent=1 // pred_region
      %119 = dma.done [#allocation4], 64
    $region29: #{tpu_custom_call.1} parent=1 // pred_fallthru
      _
    %120 = vsyncpa [#allocation3], 1
    %121 = vsyncpa [#allocation4], 1

</llo_original>
